<compile_context>
chip_gen: v7x
topology: tpu7x:2x2x1
jax: 0.10.0
libtpu: 0.0.40
codegen_flags: <defaults>
</compile_context>

<pallas_src>
import functools

import jax
import jax.numpy as jnp
from jax import lax
from jax.experimental import pallas as pl
from jax.experimental.pallas import tpu as pltpu


# ---------------------------------------------------------------------------
# Kernel
# ---------------------------------------------------------------------------
def _bpr_kernel(u_ref, p_ref, n_ref,      # inputs: (TB, D) tiles, native dtype
                out_ref,                  # output: (8, 256) partial-sum tile
                *, tile_b, batch_size):
    i = pl.program_id(0)

    u = u_ref[...].astype(jnp.float32)
    p = p_ref[...].astype(jnp.float32)
    n = n_ref[...].astype(jnp.float32)

    # Fused score difference: one multiply pass + one lane (XLU) reduce.
    # TODO(synk): if the gather is ever fused in-kernel (making compute
    # visible), switch this D<128 lane-reduce to an MXU (u*(p-n)) @ ones(D,1).
    x = jnp.sum(u * (p - n), axis=1, keepdims=True)                 # (TB, 1)

    # Numerically stable softplus(-x) == -log(sigmoid(x)).
    per_ex = jnp.maximum(-x, 0.0) + jnp.log1p(jnp.exp(-jnp.abs(x)))

    # Single fused L2 reduction.
    sq_row = jnp.sum(u * u + p * p + n * n, axis=1, keepdims=True)  # (TB, 1)

    # Mask padded rows out of BOTH terms (padded index slots gather row 0).
    row_ids = i * tile_b + lax.broadcasted_iota(jnp.int32, (tile_b, 1), 0)
    valid = row_ids < batch_size
    bpr_partial = jnp.sum(jnp.where(valid, per_ex, 0.0))
    l2_partial = jnp.sum(jnp.where(valid, sq_row, 0.0))

    # One lane-dense (8, 256) store: BPR partial in lanes [0,128),
    # L2 partial in lanes [128,256).
    lane = lax.broadcasted_iota(jnp.int32, (8, 256), 1)
    out_ref[...] = jnp.where(lane < 128, bpr_partial, l2_partial)


# ---------------------------------------------------------------------------
# Tiling / VMEM sizing helpers
# ---------------------------------------------------------------------------
def _sublane_multiple(dtype):
    """Rows per sublane tile for a dtype (f32: 8, bf16: 16, int8/fp8: 32)."""
    itemsize = jnp.dtype(dtype).itemsize
    return {4: 8, 2: 16, 1: 32}.get(itemsize, 8)


def _vmem_capacity_bytes():
    """Physical VMEM per TensorCore; conservative fallback if query fails."""
    try:
        info = pltpu.get_tpu_info()
        for name in ("vmem_capacity_bytes", "vmem_bytes", "vmem_size_bytes"):
            val = getattr(info, name, None)
            if val:
                return int(val)
    except Exception:
        pass
    return 64 * 1024 * 1024           # v7x per-core size: safe everywhere


def _vmem_limit_bytes():
    """Scoped-VMEM limit: ~3/4 of physical, capped at 96 MiB.

    v5e/v6e (128 MiB) -> 96 MiB; v7x (64 MiB/TC) -> 48 MiB.
    """
    return min((_vmem_capacity_bytes() * 3) // 4, 96 * 1024 * 1024)


def _round_up(x, m):
    return ((x + m - 1) // m) * m


def _choose_tiling(batch, dim, dtype, vmem_limit):
    """Pick (tile_b, padded_batch) from the real VMEM footprint.

    Footprint per row: 3 inputs x 2 pipeline buffers at the lane-padded width
    in the native dtype, plus headroom for ~4 f32-wide elementwise temporaries
    inside the kernel.  VMEM is the only limiter (no artificial row cap).
    """
    sub = _sublane_multiple(dtype)
    lanes = _round_up(max(dim, 1), 128)
    itemsize = jnp.dtype(dtype).itemsize

    per_row = 3 * 2 * lanes * itemsize + 4 * lanes * 4
    budget = max(vmem_limit - 8 * 1024 * 1024, 4 * 1024 * 1024)
    cap = max(sub, (budget // per_row) // sub * sub)

    b_min = _round_up(batch, sub)
    # Keep >= 2 grid tiles whenever the batch allows it so v7x can split the
    # "parallel" grid axis across both TensorCores.
    if b_min >= 2 * sub:
        half = _round_up((b_min + 1) // 2, sub)
        cap = min(cap, half)

    tile_b = min(cap, b_min)
    padded = _round_up(b_min, tile_b)
    return tile_b, padded


# ---------------------------------------------------------------------------
# Forward pass (matches BPR.forward -> (total_loss, bpr_loss, reg_loss))
# ---------------------------------------------------------------------------
def bpr_forward(user_emb, item_emb, uids, pos, neg, reg_weight, tile_b=None):
    """Returns (total_loss, bpr_loss, reg_loss) as f32 scalars."""
    B = int(uids.shape[0])
    D = int(user_emb.shape[1])
    emb_dtype = user_emb.dtype
    sub = _sublane_multiple(emb_dtype)
    vmem_limit = _vmem_limit_bytes()

    if tile_b is None:
        tile_b, padded = _choose_tiling(B, D, emb_dtype, vmem_limit)
    else:
        tile_b = max(sub, (int(tile_b) // sub) * sub)
        padded = _round_up(_round_up(B, sub), tile_b)
    num_tiles = padded // tile_b

    # Pad the tiny int32 index arrays (NOT the gathered (B, D) activations).
    uids = jnp.asarray(uids, jnp.int32)
    pos = jnp.asarray(pos, jnp.int32)
    neg = jnp.asarray(neg, jnp.int32)
    if padded != B:
        pad = padded - B
        uids = jnp.pad(uids, (0, pad))
        pos = jnp.pad(pos, (0, pad))
        neg = jnp.pad(neg, (0, pad))

    # Gather in the table's native dtype (bf16 tables => half the HBM read
    # traffic); the kernel upcasts per tile.
    user_e = user_emb[uids]          # (padded, D)
    pos_e = item_emb[pos]            # (padded, D)
    neg_e = item_emb[neg]            # (padded, D)

    kernel = functools.partial(_bpr_kernel, tile_b=tile_b, batch_size=B)
    in_spec = pl.BlockSpec((tile_b, D), lambda i: (i, 0))
    out_spec = pl.BlockSpec((8, 256), lambda i: (i, 0))

    out = pl.pallas_call(
        kernel,
        out_shape=jax.ShapeDtypeStruct((num_tiles * 8, 256), jnp.float32),
        grid_spec=pltpu.PrefetchScalarGridSpec(
            num_scalar_prefetch=0,
            grid=(num_tiles,),
            in_specs=[in_spec, in_spec, in_spec],
            out_specs=out_spec,
        ),
        compiler_params=pltpu.CompilerParams(
            dimension_semantics=("parallel",),   # tiles independent
            vmem_limit_bytes=vmem_limit,         # generation-aware
        ),
    )(user_e, pos_e, neg_e)

    # Tiny final reduction + scaling in plain JAX.
    parts = out.reshape(num_tiles, 8, 256)
    bpr_sum = jnp.sum(parts[:, 0, 0])
    l2_sum = jnp.sum(parts[:, 0, 128])
    inv_b = jnp.float32(1.0 / B)
    bpr = bpr_sum * inv_b
    reg = jnp.float32(reg_weight) * l2_sum * inv_b
    total = bpr + reg
    return total, bpr, reg


# ---------------------------------------------------------------------------
# Pure-JAX reference (mirrors the PyTorch module)
# ---------------------------------------------------------------------------
def _reference(user_emb, item_emb, uids, pos, neg, reg_weight):
    u = user_emb[uids].astype(jnp.float32)
    p = item_emb[pos].astype(jnp.float32)
    n = item_emb[neg].astype(jnp.float32)
    pos_s = jnp.sum(u * p, axis=1)
    neg_s = jnp.sum(u * n, axis=1)
    bpr = -jnp.log(jax.nn.sigmoid(pos_s - neg_s)).mean()
    l2 = (jnp.sum(u ** 2) + jnp.sum(p ** 2) + jnp.sum(n ** 2)) / u.shape[0]
    reg = reg_weight * l2
    return bpr + reg, bpr, reg


def xavier_uniform(key, num, dim):
    bound = (6.0 / (num + dim)) ** 0.5
    return jax.random.uniform(key, (num, dim), jnp.float32, -bound, bound)


if __name__ == "__main__":
    # Small synthetic config consistent with the module's __init__.
    num_users, num_items, embedding_dim = 64, 128, 32
    reg_weight = 1e-4

    key = jax.random.PRNGKey(0)
    k_u, k_i, k1, k2, k3, k4, k5, k6 = jax.random.split(key, 8)

    user_emb = xavier_uniform(k_u, num_users, embedding_dim)
    item_emb = xavier_uniform(k_i, num_items, embedding_dim)

    # Case 1: batch not a multiple of 8 -> index padding + masked rows; the
    # auto-sizer splits into 2 tiles (megacore-friendly on v7x).
    b1 = 13
    uids1 = jax.random.randint(k1, (b1,), 0, num_users, dtype=jnp.int32)
    pos1 = jax.random.randint(k2, (b1,), 0, num_items, dtype=jnp.int32)
    neg1 = jax.random.randint(k3, (b1,), 0, num_items, dtype=jnp.int32)
    out1 = bpr_forward(user_emb, item_emb, uids1, pos1, neg1, reg_weight)
    jax.block_until_ready(out1)
    ref1 = _reference(user_emb, item_emb, uids1, pos1, neg1, reg_weight)
    for got, exp in zip(out1, ref1):
        assert jnp.allclose(got, exp, rtol=1e-5, atol=1e-5), (got, exp)

    # Case 2: multi-tile grid (forced small tile) with a masked tail tile.
    b2 = 40
    uids2 = jax.random.randint(k4, (b2,), 0, num_users, dtype=jnp.int32)
    pos2 = jax.random.randint(k5, (b2,), 0, num_items, dtype=jnp.int32)
    neg2 = jax.random.randint(k6, (b2,), 0, num_items, dtype=jnp.int32)
    out2 = bpr_forward(user_emb, item_emb, uids2, pos2, neg2, reg_weight,
                       tile_b=16)
    jax.block_until_ready(out2)
    ref2 = _reference(user_emb, item_emb, uids2, pos2, neg2, reg_weight)
    for got, exp in zip(out2, ref2):
        assert jnp.allclose(got, exp, rtol=1e-5, atol=1e-5), (got, exp)

    # Case 3: bf16 embedding tables (native-dtype DMA path, 16-row sublanes).
    user_bf16 = user_emb.astype(jnp.bfloat16)
    item_bf16 = item_emb.astype(jnp.bfloat16)
    b3 = 24
    uids3 = jax.random.randint(k1, (b3,), 0, num_users, dtype=jnp.int32)
    pos3 = jax.random.randint(k2, (b3,), 0, num_items, dtype=jnp.int32)
    neg3 = jax.random.randint(k3, (b3,), 0, num_items, dtype=jnp.int32)
    out3 = bpr_forward(user_bf16, item_bf16, uids3, pos3, neg3, reg_weight)
    jax.block_until_ready(out3)
    ref3 = _reference(user_bf16, item_bf16, uids3, pos3, neg3, reg_weight)
    for got, exp in zip(out3, ref3):
        assert jnp.allclose(got, exp, rtol=1e-4, atol=1e-4), (got, exp)

    print("KERNEL_OK")
</pallas_src>

<mosaic_0001>
module attributes {stable_mosaic.version = 11 : i64} {
  func.func @_bpr_kernel(%arg0: i32, %arg1: memref<8x32xf32, #tpu.memory_space<vmem>>, %arg2: memref<8x32xf32, #tpu.memory_space<vmem>>, %arg3: memref<8x32xf32, #tpu.memory_space<vmem>>, %arg4: memref<8x256xf32, #tpu.memory_space<vmem>>) attributes {dimension_semantics = [#tpu.dimension_semantics<parallel>], iteration_bounds = array<i64: 2>, scalar_prefetch = 0 : i64, scratch_operands = 0 : i64, tpu.core_type = #tpu.core_type<tc>, window_params = [{transform_indices = @transform_0, window_bounds = array<i64: 8, 32>}, {transform_indices = @transform_1, window_bounds = array<i64: 8, 32>}, {transform_indices = @transform_2, window_bounds = array<i64: 8, 32>}, {transform_indices = @transform_3, window_bounds = array<i64: 8, 256>}]} {
    %c0 = arith.constant 0 : index
    %c0_0 = arith.constant 0 : index
    %0 = vector.load %arg1[%c0, %c0_0] : memref<8x32xf32, #tpu.memory_space<vmem>>, vector<8x32xf32>
    %c0_1 = arith.constant 0 : index
    %c0_2 = arith.constant 0 : index
    %1 = vector.load %arg2[%c0_1, %c0_2] : memref<8x32xf32, #tpu.memory_space<vmem>>, vector<8x32xf32>
    %c0_3 = arith.constant 0 : index
    %c0_4 = arith.constant 0 : index
    %2 = vector.load %arg3[%c0_3, %c0_4] : memref<8x32xf32, #tpu.memory_space<vmem>>, vector<8x32xf32>
    %3 = arith.subf %1, %2 : vector<8x32xf32>
    %4 = arith.mulf %0, %3 : vector<8x32xf32>
    %cst = arith.constant dense<0.000000e+00> : vector<8xf32>
    %5 = vector.multi_reduction <add>, %4, %cst [1] : vector<8x32xf32> to vector<8xf32>
    %6 = vector.shape_cast %5 : vector<8xf32> to vector<8x1xf32>
    %cst_5 = arith.constant 0.000000e+00 : f32
    %7 = vector.broadcast %cst_5 : f32 to vector<8x1xf32>
    %8 = arith.subf %7, %6 : vector<8x1xf32>
    %cst_6 = arith.constant 0.000000e+00 : f32
    %9 = vector.broadcast %cst_6 : f32 to vector<8x1xf32>
    %10 = arith.maximumf %8, %9 : vector<8x1xf32>
    %11 = math.absf %6 : vector<8x1xf32>
    %cst_7 = arith.constant 0.000000e+00 : f32
    %12 = vector.broadcast %cst_7 : f32 to vector<8x1xf32>
    %13 = arith.subf %12, %11 : vector<8x1xf32>
    %14 = math.exp %13 : vector<8x1xf32>
    %15 = math.log1p %14 : vector<8x1xf32>
    %16 = arith.addf %10, %15 : vector<8x1xf32>
    %17 = arith.mulf %0, %0 : vector<8x32xf32>
    %18 = arith.mulf %1, %1 : vector<8x32xf32>
    %19 = arith.addf %17, %18 : vector<8x32xf32>
    %20 = arith.mulf %2, %2 : vector<8x32xf32>
    %21 = arith.addf %19, %20 : vector<8x32xf32>
    %cst_8 = arith.constant dense<0.000000e+00> : vector<8xf32>
    %22 = vector.multi_reduction <add>, %21, %cst_8 [1] : vector<8x32xf32> to vector<8xf32>
    %23 = vector.shape_cast %22 : vector<8xf32> to vector<8x1xf32>
    %c8_i32 = arith.constant 8 : i32
    %24 = arith.muli %arg0, %c8_i32 : i32
    %25 = tpu.iota {dimensions = array<i32: 0>} : vector<8x1xi32>
    %26 = vector.broadcast %24 : i32 to vector<8x1xi32>
    %27 = arith.addi %26, %25 : vector<8x1xi32>
    %c13_i32 = arith.constant 13 : i32
    %28 = vector.broadcast %c13_i32 : i32 to vector<8x1xi32>
    %29 = arith.cmpi slt, %27, %28 : vector<8x1xi32>
    %cst_9 = arith.constant 0.000000e+00 : f32
    %30 = vector.broadcast %cst_9 : f32 to vector<8x1xf32>
    %31 = arith.select %29, %16, %30 : vector<8x1xi1>, vector<8x1xf32>
    %32 = vector.shape_cast %31 : vector<8x1xf32> to vector<1x8x1xf32>
    %cst_10 = arith.constant dense<0.000000e+00> : vector<1xf32>
    %33 = vector.multi_reduction <add>, %32, %cst_10 [1, 2] : vector<1x8x1xf32> to vector<1xf32>
    %34 = vector.shape_cast %33 : vector<1xf32> to vector<1x1x1xf32>
    %35 = vector.extract %34[0, 0, 0] : f32 from vector<1x1x1xf32>
    %cst_11 = arith.constant 0.000000e+00 : f32
    %36 = vector.broadcast %cst_11 : f32 to vector<8x1xf32>
    %37 = arith.select %29, %23, %36 : vector<8x1xi1>, vector<8x1xf32>
    %38 = vector.shape_cast %37 : vector<8x1xf32> to vector<1x8x1xf32>
    %cst_12 = arith.constant dense<0.000000e+00> : vector<1xf32>
    %39 = vector.multi_reduction <add>, %38, %cst_12 [1, 2] : vector<1x8x1xf32> to vector<1xf32>
    %40 = vector.shape_cast %39 : vector<1xf32> to vector<1x1x1xf32>
    %41 = vector.extract %40[0, 0, 0] : f32 from vector<1x1x1xf32>
    %42 = tpu.iota {dimensions = array<i32: 1>} : vector<8x256xi32>
    %c128_i32 = arith.constant 128 : i32
    %43 = vector.broadcast %c128_i32 : i32 to vector<8x256xi32>
    %44 = arith.cmpi slt, %42, %43 : vector<8x256xi32>
    %45 = vector.broadcast %35 : f32 to vector<8x256xf32>
    %46 = vector.broadcast %41 : f32 to vector<8x256xf32>
    %47 = arith.select %44, %45, %46 : vector<8x256xi1>, vector<8x256xf32>
    %c0_13 = arith.constant 0 : index
    %c0_14 = arith.constant 0 : index
    %48 = vector.load %arg4[%c0_13, %c0_14] : memref<8x256xf32, #tpu.memory_space<vmem>>, vector<8x256xf32>
    tpu.vector_store %arg4[%c0_13, %c0_14], %47 {strides = array<i32>} : memref<8x256xf32, #tpu.memory_space<vmem>>, vector<8x256xf32>,
    return
  }
  func.func @transform_0(%arg0: i32) -> (i32, i32) {
    %c0_i32 = arith.constant 0 : i32
    %c0_i32_0 = arith.constant 0 : i32
    return %arg0, %c0_i32 : i32, i32
  }
  func.func @transform_1(%arg0: i32) -> (i32, i32) {
    %c0_i32 = arith.constant 0 : i32
    %c0_i32_0 = arith.constant 0 : i32
    return %arg0, %c0_i32 : i32, i32
  }
  func.func @transform_2(%arg0: i32) -> (i32, i32) {
    %c0_i32 = arith.constant 0 : i32
    %c0_i32_0 = arith.constant 0 : i32
    return %arg0, %c0_i32 : i32, i32
  }
  func.func @transform_3(%arg0: i32) -> (i32, i32) {
    %c0_i32 = arith.constant 0 : i32
    %c0_i32_0 = arith.constant 0 : i32
    return %arg0, %c0_i32 : i32, i32
  }
}

</mosaic_0001>

<llo_original>
// kernel: tpu_custom_call.1
$region0: #{tpu_custom_call.1}
  #allocation0 [shape = 'u32[]', space=smem, size = 0x4, offset = 0x4, fixed_abs, tag = 'smem constant byte address 0x4 - core index']
  #allocation1 [shape = 'u32[144,128]{1,0:T(1,128)}', space=vmem, size = 0x12000, scoped, tag = 'internal scratch']
  %s0 = inlined_call_operand.hbm [shape: f32[16,32], index: 0, kind: input, shape index: {}]
  %s1 = inlined_call_operand.hbm [shape: f32[16,32], index: 1, kind: input, shape index: {}]
  %s2 = inlined_call_operand.hbm [shape: f32[16,32], index: 2, kind: input, shape index: {}]
  %s3 = inlined_call_operand.hbm [shape: f32[16,256], index: 3, kind: output, shape index: {}]
  %s4 = sld [smem:[#allocation0]]
  $region57: #{tpu_custom_call.1} parent=0
    _
  %s6 = ssub.s32 1, %s4
  %s7 = scalar_select 0, %s6, %s4
  $region1: #{tpu_custom_call.1} parent=0
    #allocation2 [shape = 'u8[8192]{0}', space=vmem, size = 0x2000, scoped, tag = 'input window, operand 0']
    #allocation3 [shape = 's32[2]{0}', space=sflag, size = 0x8, scoped, tag = 'scoped memory for tpu_custom_call.1']
    #allocation4 [shape = 's32[2]{0}', space=sflag, size = 0x8, scoped, tag = 'scoped memory for tpu_custom_call.1']
    #allocation5 [shape = 'u8[8192]{0}', space=vmem, size = 0x2000, scoped, tag = 'input window, operand 1']
    #allocation6 [shape = 's32[2]{0}', space=sflag, size = 0x8, scoped, tag = 'scoped memory for tpu_custom_call.1']
    #allocation7 [shape = 'u8[8192]{0}', space=vmem, size = 0x2000, scoped, tag = 'input window, operand 2']
    #allocation8 [shape = 'u8[16384]{0}', space=vmem, size = 0x4000, scoped, tag = 'output window, operand 0']
    %8 = vsyncpa [#allocation3], 0
    %s9 = scalar_lea.sflag [#allocation3], 1
    %10 = vsyncpa %s9, 0
    %11 = vsyncpa [#allocation6], 0
    %s12 = scalar_lea.sflag [#allocation6], 1
    %13 = vsyncpa %s12, 0
    %14 = vsyncpa [#allocation4], 0
    %s15 = scalar_lea.sflag [#allocation4], 1
    %16 = vsyncpa %s15, 0
    loop: start=0, step=1, limit=4
    $region2: #{tpu_custom_call.1} parent=1 // loop_pre_header
      _
    $region3: #{tpu_custom_call.1} parent=1 // loop_header
      %s18 = sphi 0, %s22
      %p19 = scmp.ge.s32.totalorder %s18, 4
      %s28 = sphi 0, %s30
      %s31 = sphi 0, %s28
      %s32 = sphi 0, %s31
      %s48 = sphi 0, %s32
      %s54 = sphi 0, %s56
      %s57 = sphi 0, %s54
      %s58 = sphi 0, %s57
      %s74 = sphi 0, %s58
      %s80 = sphi 0, %s82
      %s83 = sphi 0, %s80
      %s84 = sphi 0, %s83
      %s100 = sphi 0, %s84
      %s106 = sphi 0, %s108
      %s109 = sphi 0, %s106
      %s110 = sphi 0, %s109
      %s126 = sphi 0, %s110
    $region4: #{tpu_custom_call.1} parent=1 // loop_header_branch
      %21 = sbr.rel (%p19) target = $region8
    $region5: #{tpu_custom_call.1} parent=1 // loop_body
      %s23 = ssub.s32 %s18, 1
      %s24 = ssub.s32 %s18, 2
      %s25 = sadd.s32 %s18, 1
      %s26 = ssub.s32 %s18, %s25
      %p27 = scmp.eq.s32.totalorder %s26, 0
      %s29 = sadd.s32 %s28, 1
      %s30 = scalar_select %p27, %s28, %s29
      %p33 = pneg %p27
      %p34 = scmp.eq.s32.totalorder %s18, 1
      %p35 = por %p33, %p34
      %p36 = scmp.ne.s32.totalorder %s28, %s31
      %p37 = scmp.eq.s32.totalorder %s18, 0
      %p38 = por %p36, %p37
      %p39 = scmp.ne.s32.totalorder %s28, %s31
      %p40 = scmp.eq.s32.totalorder %s23, 1
      %p41 = por %p39, %p40
      %p42 = scmp.ne.s32.totalorder %s31, %s32
      %p43 = scmp.eq.s32.totalorder %s23, 0
      %p44 = por %p42, %p43
      %p45 = scmp.ne.s32.totalorder %s31, %s32
      %p46 = scmp.eq.s32.totalorder %s24, 1
      %p47 = por %p45, %p46
      %p49 = scmp.ne.s32.totalorder %s32, %s48
      %p50 = scmp.eq.s32.totalorder %s24, 0
      %p51 = por %p49, %p50
      %s52 = ssub.s32 %s18, %s25
      %p53 = scmp.eq.s32.totalorder %s52, 0
      %s55 = sadd.s32 %s54, 1
      %s56 = scalar_select %p53, %s54, %s55
      %p59 = pneg %p53
      %p60 = scmp.eq.s32.totalorder %s18, 1
      %p61 = por %p59, %p60
      %p62 = scmp.ne.s32.totalorder %s54, %s57
      %p63 = scmp.eq.s32.totalorder %s18, 0
      %p64 = por %p62, %p63
      %p65 = scmp.ne.s32.totalorder %s54, %s57
      %p66 = scmp.eq.s32.totalorder %s23, 1
      %p67 = por %p65, %p66
      %p68 = scmp.ne.s32.totalorder %s57, %s58
      %p69 = scmp.eq.s32.totalorder %s23, 0
      %p70 = por %p68, %p69
      %p71 = scmp.ne.s32.totalorder %s57, %s58
      %p72 = scmp.eq.s32.totalorder %s24, 1
      %p73 = por %p71, %p72
      %p75 = scmp.ne.s32.totalorder %s58, %s74
      %p76 = scmp.eq.s32.totalorder %s24, 0
      %p77 = por %p75, %p76
      %s78 = ssub.s32 %s18, %s25
      %p79 = scmp.eq.s32.totalorder %s78, 0
      %s81 = sadd.s32 %s80, 1
      %s82 = scalar_select %p79, %s80, %s81
      %p85 = pneg %p79
      %p86 = scmp.eq.s32.totalorder %s18, 1
      %p87 = por %p85, %p86
      %p88 = scmp.ne.s32.totalorder %s80, %s83
      %p89 = scmp.eq.s32.totalorder %s18, 0
      %p90 = por %p88, %p89
      %p91 = scmp.ne.s32.totalorder %s80, %s83
      %p92 = scmp.eq.s32.totalorder %s23, 1
      %p93 = por %p91, %p92
      %p94 = scmp.ne.s32.totalorder %s83, %s84
      %p95 = scmp.eq.s32.totalorder %s23, 0
      %p96 = por %p94, %p95
      %p97 = scmp.ne.s32.totalorder %s83, %s84
      %p98 = scmp.eq.s32.totalorder %s24, 1
      %p99 = por %p97, %p98
      %p101 = scmp.ne.s32.totalorder %s84, %s100
      %p102 = scmp.eq.s32.totalorder %s24, 0
      %p103 = por %p101, %p102
      %s104 = ssub.s32 %s18, %s25
      %p105 = scmp.eq.s32.totalorder %s104, 0
      %s107 = sadd.s32 %s106, 1
      %s108 = scalar_select %p105, %s106, %s107
      %p111 = pneg %p105
      %p112 = scmp.eq.s32.totalorder %s18, 1
      %p113 = por %p111, %p112
      %p114 = scmp.ne.s32.totalorder %s106, %s109
      %p115 = scmp.eq.s32.totalorder %s18, 0
      %p116 = por %p114, %p115
      %p117 = scmp.ne.s32.totalorder %s106, %s109
      %p118 = scmp.eq.s32.totalorder %s23, 1
      %p119 = por %p117, %p118
      %p120 = scmp.ne.s32.totalorder %s109, %s110
      %p121 = scmp.eq.s32.totalorder %s23, 0
      %p122 = por %p120, %p121
      %p123 = scmp.ne.s32.totalorder %s109, %s110
      %p124 = scmp.eq.s32.totalorder %s24, 1
      %p125 = por %p123, %p124
      %p127 = scmp.ne.s32.totalorder %s110, %s126
      %p128 = scmp.eq.s32.totalorder %s24, 0
      %p129 = por %p127, %p128
      %p130 = scmp.le.s32.totalorder 1, %s18
      %p131 = scmp.lt.s32.totalorder %s18, 3
      %p132 = pnand %p130, %p131
      %p133 = pneg %p132
      // Predicated region
      $region9: #{tpu_custom_call.1} parent=5 // pred_check
        _
      $region10: #{tpu_custom_call.1} parent=5 // pred_check_branch
        %135 = sbr.rel (%p132) target = $region12
      $region11: #{tpu_custom_call.1} parent=5 // pred_region
        %s136 = ssub.s32 %s18, 1
      $region12: #{tpu_custom_call.1} parent=5 // pred_fallthru
        _
      %p137 = scmp.lt.s32.totalorder %s18, 2
      // Predicated region
      $region13: #{tpu_custom_call.1} parent=5 // pred_check
        %p138 = pneg %p137
      $region14: #{tpu_custom_call.1} parent=5 // pred_check_branch
        %140 = sbr.rel (%p138) target = $region16
      $region15: #{tpu_custom_call.1} parent=5 // pred_region
        // Predicated region
        $region17: #{tpu_custom_call.1} parent=15 // pred_check
          %p141 = pneg %p38
        $region18: #{tpu_custom_call.1} parent=15 // pred_check_branch
          %143 = sbr.rel (%p141) target = $region20
        $region19: #{tpu_custom_call.1} parent=15 // pred_region
          %s144 = sand.u32 %s28, 1
          %s145 = scalar_lea.sflag [#allocation3], %s144
          %s146 = sand.u32 %s28, 1
          %s147 = smul.addr %s146, 8
          %s148 = scalar_lea.vmem [#allocation2], %s147
          %s150 = ssub.s32 128, 128
          %151 = vsyncadd %s145, %s150
          %s152 = smul.addr %s18, 128
          %s153 = scalar_lea.hbm %s0, %s152
          %s155 = sshll.u32 %s148, 4
          %s156 = int_to_ptr.vmem [resolvable:$true] %s155
          %158 = dma.hbm_to_vmem [thread:$0]  %s153, 128, %s156, %s145
        $region20: #{tpu_custom_call.1} parent=15 // pred_fallthru
          _
        // Predicated region
        $region21: #{tpu_custom_call.1} parent=15 // pred_check
          %p159 = pneg %p64
        $region22: #{tpu_custom_call.1} parent=15 // pred_check_branch
          %161 = sbr.rel (%p159) target = $region24
        $region23: #{tpu_custom_call.1} parent=15 // pred_region
          %s162 = sand.u32 %s18, 1
          %s163 = scalar_lea.sflag [#allocation6], %s162
          %s164 = sand.u32 %s54, 1
          %s165 = smul.addr %s164, 8
          %s166 = scalar_lea.vmem [#allocation5], %s165
          %s168 = ssub.s32 128, 128
          %169 = vsyncadd %s163, %s168
          %s170 = smul.addr %s18, 128
          %s171 = scalar_lea.hbm %s1, %s170
          %s173 = sshll.u32 %s166, 4
          %s174 = int_to_ptr.vmem [resolvable:$true] %s173
          %176 = dma.hbm_to_vmem [thread:$0]  %s171, 128, %s174, %s163
        $region24: #{tpu_custom_call.1} parent=15 // pred_fallthru
          _
        // Predicated region
        $region25: #{tpu_custom_call.1} parent=15 // pred_check
          %p177 = pneg %p90
        $region26: #{tpu_custom_call.1} parent=15 // pred_check_branch
          %179 = sbr.rel (%p177) target = $region28
        $region27: #{tpu_custom_call.1} parent=15 // pred_region
          %s180 = sand.u32 %s18, 1
          %s181 = scalar_lea.sflag [#allocation6], %s180
          %s182 = sand.u32 %s80, 1
          %s183 = smul.addr %s182, 8
          %s184 = scalar_lea.vmem [#allocation7], %s183
          %s186 = ssub.s32 128, 128
          %187 = vsyncadd %s181, %s186
          %s188 = smul.addr %s18, 128
          %s189 = scalar_lea.hbm %s2, %s188
          %s191 = sshll.u32 %s184, 4
          %s192 = int_to_ptr.vmem [resolvable:$true] %s191
          %194 = dma.hbm_to_vmem [thread:$0]  %s189, 128, %s192, %s181
        $region28: #{tpu_custom_call.1} parent=15 // pred_fallthru
          _
      $region16: #{tpu_custom_call.1} parent=5 // pred_fallthru
        _
      %p195 = scmp.le.s32.totalorder 1, %s18
      %p196 = scmp.lt.s32.totalorder %s18, 3
      %p197 = pnand %p195, %p196
      %p198 = pneg %p197
      // Predicated region
      $region29: #{tpu_custom_call.1} parent=5 // pred_check
        _
      $region30: #{tpu_custom_call.1} parent=5 // pred_check_branch
        %200 = sbr.rel (%p197) target = $region32
      $region31: #{tpu_custom_call.1} parent=5 // pred_region
        %s201 = ssub.s32 %s18, 1
        %s202 = sand.u32 %s31, 1
        %s203 = scalar_lea.sflag [#allocation3], %s202
        %s204 = sand.u32 %s31, 1
        %s205 = smul.addr %s204, 8
        %s206 = scalar_lea.vmem [#allocation2], %s205
        // Predicated region
        $region33: #{tpu_custom_call.1} parent=31 // pred_check
          %p207 = pneg %p44
        $region34: #{tpu_custom_call.1} parent=31 // pred_check_branch
          %209 = sbr.rel (%p207) target = $region36
        $region35: #{tpu_custom_call.1} parent=31 // pred_region
          %210 = dma.done %s203, 128
        $region36: #{tpu_custom_call.1} parent=31 // pred_fallthru
          _
        %s211 = sand.u32 %s23, 1
        %s212 = scalar_lea.sflag [#allocation6], %s211
        %s213 = sand.u32 %s57, 1
        %s214 = smul.addr %s213, 8
        %s215 = scalar_lea.vmem [#allocation5], %s214
        // Predicated region
        $region37: #{tpu_custom_call.1} parent=31 // pred_check
          %p216 = pneg %p70
        $region38: #{tpu_custom_call.1} parent=31 // pred_check_branch
          %218 = sbr.rel (%p216) target = $region40
        $region39: #{tpu_custom_call.1} parent=31 // pred_region
          %219 = dma.done %s212, 128
        $region40: #{tpu_custom_call.1} parent=31 // pred_fallthru
          _
        %s220 = sand.u32 %s23, 1
        %s221 = scalar_lea.sflag [#allocation6], %s220
        %s222 = sand.u32 %s83, 1
        %s223 = smul.addr %s222, 8
        %s224 = scalar_lea.vmem [#allocation7], %s223
        // Predicated region
        $region41: #{tpu_custom_call.1} parent=31 // pred_check
          %p225 = pneg %p96
        $region42: #{tpu_custom_call.1} parent=31 // pred_check_branch
          %227 = sbr.rel (%p225) target = $region44
        $region43: #{tpu_custom_call.1} parent=31 // pred_region
          %228 = dma.done %s221, 128
        $region44: #{tpu_custom_call.1} parent=31 // pred_fallthru
          _
        %s229 = sand.u32 %s31, 1
        %s230 = scalar_lea.sflag [#allocation3], %s229
        %s231 = sand.u32 %s31, 1
        %s232 = smul.addr %s231, 8
        %s233 = scalar_lea.vmem [#allocation2], %s232
        %p234 = pneg %p44
        %p235 = pneg %p41
        %s236 = sand.u32 %s23, 1
        %s237 = scalar_lea.sflag [#allocation6], %s236
        %s238 = sand.u32 %s57, 1
        %s239 = smul.addr %s238, 8
        %s240 = scalar_lea.vmem [#allocation5], %s239
        %p241 = pneg %p70
        %p242 = pneg %p67
        %s243 = sand.u32 %s23, 1
        %s244 = scalar_lea.sflag [#allocation6], %s243
        %s245 = sand.u32 %s83, 1
        %s246 = smul.addr %s245, 8
        %s247 = scalar_lea.vmem [#allocation7], %s246
        %p248 = pneg %p96
        %p249 = pneg %p93
        %p250 = pneg %p122
        %p251 = pneg %p119
        %s252 = sand.u32 %s109, 1
        %s253 = scalar_lea.sflag [#allocation4], %s252
        %s254 = sand.u32 %s109, 1
        %s255 = smul.addr %s254, 16
        %s256 = scalar_lea.vmem [#allocation8], %s255
        %v257 = vld [vmem:[%s206] sm:$0xff]
        %v258 = vld [vmem:[%s215] sm:$0xff]
        %v259 = vld [vmem:[%s224] sm:$0xff]
        %v260 = vsub.f32 %v258, %v259
        %v261 = vmul.f32 %v257, %v260
        %vm262 = vcmask 261120
        %v263 = vsel %vm262, %v261, 0.0
        %264 = vadd.xlane.f32.xlu0 %v263
        %v265 = vpop.xlane.xlu0 %264
        %v266 = vsub.f32 0.0, %v265
        %v267 = vmax.f32 %v266, 0.0
        %v268 = vand.u32 2147483647, %v265
        %v269 = vsub.f32 0.0, %v268
        %v270 = vmul.f32 %v269, 1.442695
        %v271 = vpow.pop %v270
        %v272 = vadd.f32 %v271, 1.0
        %v273 = vlog2.pop %v272
        %v274 = vmul.f32 %v273, 0.6931472
        %v275 = vmul.f32 -0.5, %v271
        %v276 = vadd.f32 %v275, 1.0
        %v277 = vmul.f32 %v276, %v271
        %v278 = vand.u32 2147483647, %v271
        %vm279 = vcmp.lt.f32.partialorder %v278, 0.0004427343
        %v280 = vsel %vm279, %v277, %v274
        %v281 = vadd.f32 %v267, %v280
        %v282 = vmul.f32 %v257, %v257
        %v283 = vmul.f32 %v258, %v258
        %v284 = vadd.f32 %v282, %v283
        %v285 = vmul.f32 %v259, %v259
        %v286 = vadd.f32 %v284, %v285
        %v287 = vsel %vm262, %v286, 0.0
        %288 = vadd.xlane.f32.xlu0 %v287
        %v289 = vpop.xlane.xlu0 %288
        %s290 = smul.u32 %s23, 8
        %v291 = vlaneseq
        %v292 = vshrl.u32 %v291, 7
        %v293 = vstv %s290
        %v294 = vadd.s32 %v293, %v292
        %vm295 = vcmp.lt.s32.totalorder %v294, 13
        %v296 = vsel %vm295, %v281, 0.0
        %vm297 = vcmask 7168
        %v298 = vsel %vm297, %v296, 0.0
        %299 = vadd.xlane.f32.xlu0 %v298
        %v300 = vpop.xlane.xlu0 %299
        %v301 = vrot.slane %v300, 4
        %v302 = vadd.f32 %v300, %v301
        %v303 = vrot.slane %v302, 2
        %v304 = vadd.f32 %v302, %v303
        %v305 = vrot.slane %v304, 1
        %v306 = vadd.f32 %v304, %v305
        %s307 = vtos %v306
        %v308 = vsel %vm295, %v289, 0.0
        %v309 = vsel %vm297, %v308, 0.0
        %310 = vadd.xlane.f32.xlu0 %v309
        %v311 = vpop.xlane.xlu0 %310
        %v312 = vrot.slane %v311, 4
        %v313 = vadd.f32 %v311, %v312
        %v314 = vrot.slane %v313, 2
        %v315 = vadd.f32 %v313, %v314
        %v316 = vrot.slane %v315, 1
        %v317 = vadd.f32 %v315, %v316
        %s318 = vtos %v317
        %v319 = vlaneseq
        %v320 = vand.u32 %v319, 127
        %v321 = vadd.s32 %v320, 128
        %vm322 = vcmp.lt.s32.totalorder %v320, 128
        %vm323 = vcmp.lt.s32.totalorder %v321, 128
        %v324 = vstv %s307
        %v325 = vstv %s318
        %v326 = vsel %vm322, %v324, %v325
        %v327 = vsel %vm323, %v324, %v325
        %328 = vst [vmem:[%s256] sm:$0xff] %v326
        %329 = vst [vmem:[%s256 + $0x8] sm:$0xff] %v327
        %s330 = sand.u32 %s109, 1
        %s331 = scalar_lea.sflag [#allocation4], %s330
        %s332 = sand.u32 %s109, 1
        %s333 = smul.addr %s332, 16
        %s334 = scalar_lea.vmem [#allocation8], %s333
        // Predicated region
        $region45: #{tpu_custom_call.1} parent=31 // pred_check
          %p335 = pneg %p119
        $region46: #{tpu_custom_call.1} parent=31 // pred_check_branch
          %337 = sbr.rel (%p335) target = $region48
        $region47: #{tpu_custom_call.1} parent=31 // pred_region
          %s339 = ssub.s32 256, 256
          %340 = vsyncadd %s331, %s339
          %s341 = smul.addr %s23, 2
          %s342 = smul.addr %s341, 128
          %s343 = scalar_lea.hbm %s3, %s342
          %s345 = sshll.u32 %s334, 4
          %s346 = int_to_ptr.vmem [resolvable:$true] %s345
          %348 = dma.vmem_to_hbm [thread:$0]  %s346, 256, %s343, %s331
        $region48: #{tpu_custom_call.1} parent=31 // pred_fallthru
          _
      $region32: #{tpu_custom_call.1} parent=5 // pred_fallthru
        _
      %p349 = scmp.le.s32.totalorder 2, %s18
      // Predicated region
      $region49: #{tpu_custom_call.1} parent=5 // pred_check
        %p350 = pneg %p349
      $region50: #{tpu_custom_call.1} parent=5 // pred_check_branch
        %352 = sbr.rel (%p350) target = $region52
      $region51: #{tpu_custom_call.1} parent=5 // pred_region
        %s353 = ssub.s32 %s18, 2
        // Predicated region
        $region53: #{tpu_custom_call.1} parent=51 // pred_check
          %p354 = pneg %p125
        $region54: #{tpu_custom_call.1} parent=51 // pred_check_branch
          %356 = sbr.rel (%p354) target = $region56
        $region55: #{tpu_custom_call.1} parent=51 // pred_region
          %s357 = sand.u32 %s110, 1
          %s358 = scalar_lea.sflag [#allocation4], %s357
          %s359 = sand.u32 %s110, 1
          %s360 = smul.addr %s359, 16
          %s361 = scalar_lea.vmem [#allocation8], %s360
          %362 = dma.done %s358, 256
        $region56: #{tpu_custom_call.1} parent=51 // pred_fallthru
          _
      $region52: #{tpu_custom_call.1} parent=5 // pred_fallthru
        _
    $region6: #{tpu_custom_call.1} parent=1 // loop_footer
      %s22 = sadd.s32 1, %s18
    $region7: #{tpu_custom_call.1} parent=1 // loop_footer_branch
      %17 = sbr.rel target = $region3
    $region8: #{tpu_custom_call.1} parent=1 // loop_exit
      _
    %363 = vsyncpa [#allocation3], 1
    %s364 = scalar_lea.sflag [#allocation3], 1
    %365 = vsyncpa %s364, 1
    %366 = vsyncpa [#allocation6], 1
    %s367 = scalar_lea.sflag [#allocation6], 1
    %368 = vsyncpa %s367, 1
    %369 = vsyncpa [#allocation4], 1
    %s370 = scalar_lea.sflag [#allocation4], 1
    %371 = vsyncpa %s370, 1

</llo_original>
